<compile_context>
chip_gen: v7x
topology: tpu7x:2x2x1
jax: 0.10.0
libtpu: 0.0.40
codegen_flags: <defaults>
</compile_context>

<pallas_src>
import functools

import jax
import jax.numpy as jnp
from jax.experimental import pallas as pl
from jax.experimental.pallas import tpu as pltpu


def _channel_attention_kernel(x_ref, w1_ref, w2_ref, o_ref,
                              acc_sum_ref, acc_max_ref,
                              *, hw, t_hw, lane, n_chunks, ragged, inv_hw):
    # x_ref:       (1, C, t_hw)  native dtype (f32/bf16)
    # w1_ref:      (hid, C)      f32   (fc1 weight, as-is)
    # w2_ref:      (C, hid)      f32   (fc2 weight, as-is)
    # o_ref:       (1, C, 1)     f32   output block
    # acc_sum_ref: (C, lane)     f32   running-sum partials (lanes folded at end)
    # acc_max_ref: (C, lane)     f32   running-max partials
    k = pl.program_id(1)

    @pl.when(k == 0)
    def _():
        acc_sum_ref[...] = jnp.zeros_like(acc_sum_ref)
        acc_max_ref[...] = jnp.full_like(acc_max_ref, -jnp.inf)

    # Hot loop: pure VPU vadd/vmax per loaded chunk; no per-tile XLU reduce.
    for j in range(n_chunks):
        chunk = x_ref[0, :, j * lane:(j + 1) * lane].astype(jnp.float32)  # (C, lane)
        if ragged:
            pos = (k * t_hw + j * lane
                   + jax.lax.broadcasted_iota(jnp.int32, chunk.shape, 1))
            valid = pos < hw
            sum_in = jnp.where(valid, chunk, 0.0)
            max_in = jnp.where(valid, chunk, -jnp.inf)
        else:
            sum_in = chunk
            max_in = chunk
        acc_sum_ref[...] = acc_sum_ref[...] + sum_in
        acc_max_ref[...] = jnp.maximum(acc_max_ref[...], max_in)

    @pl.when(k == pl.num_programs(1) - 1)
    def _():
        # Single cross-lane fold + scale by 1/(H*W) (true spatial size).
        avg = jnp.sum(acc_sum_ref[...], axis=-1, keepdims=True) * jnp.float32(inv_hw)  # (C,1)
        mx = jnp.max(acc_max_ref[...], axis=-1, keepdims=True)                          # (C,1)
        pooled = jnp.concatenate([avg, mx], axis=1)                                     # (C,2)
        # fc1 / relu / fc2 run once for both pooled vectors (2 columns).
        h = jnp.maximum(
            jnp.dot(w1_ref[...], pooled, preferred_element_type=jnp.float32), 0.0)      # (hid,2)
        y = jnp.dot(w2_ref[...], h, preferred_element_type=jnp.float32)                 # (C,2)
        att = jax.nn.sigmoid(y[:, 0:1] + y[:, 1:2])                                     # (C,1)
        o_ref[...] = att[None].astype(o_ref.dtype)                                      # (1,C,1)


def _pick_spatial_tile(hw, c, itemsize,
                       max_buf_bytes=6 * 1024 * 1024, max_lanes=4096):
    """Largest spatial tile (multiple of 128, or the full HW) that keeps one
    input buffer <= max_buf_bytes, so 2 buffers + scratch fit a 32 MiB VMEM
    budget on every TPU generation (incl. v7x's smaller VMEM)."""
    if hw <= 128:
        return hw
    cap = (max_buf_bytes // max(1, c * itemsize)) // 128 * 128
    cap = max(128, min(max_lanes, cap))
    if hw <= cap:
        return hw          # single block covering the whole spatial extent
    return cap             # multiple of 128; last tile may be ragged (masked)


@jax.jit
def channel_attention(x, w_fc1, w_fc2):
    """x: (B, C, H, W); w_fc1: (C//r, C); w_fc2: (C, C//r). Returns (B, C, 1, 1) f32."""
    B, C, H, W = x.shape
    hid = w_fc1.shape[0]
    HW = H * W

    # Free reshape; keep x's native dtype on the HBM wire (bf16 halves traffic).
    x_flat = x.reshape(B, C, HW)
    w1 = w_fc1.astype(jnp.float32)   # (hid, C)
    w2 = w_fc2.astype(jnp.float32)   # (C, hid)

    t_hw = _pick_spatial_tile(HW, C, x.dtype.itemsize)
    lane = 128 if (t_hw % 128 == 0) else t_hw
    n_chunks = t_hw // lane
    num_k = pl.cdiv(HW, t_hw)
    ragged = (HW % t_hw) != 0

    kernel = functools.partial(
        _channel_attention_kernel,
        hw=HW, t_hw=t_hw, lane=lane, n_chunks=n_chunks,
        ragged=ragged, inv_hw=1.0 / HW)

    out = pl.pallas_call(
        kernel,
        out_shape=jax.ShapeDtypeStruct((B, C, 1), jnp.float32),
        grid_spec=pltpu.PrefetchScalarGridSpec(
            num_scalar_prefetch=0,
            grid=(B, num_k),
            in_specs=[
                pl.BlockSpec((1, C, t_hw), lambda b, k: (b, 0, k)),
                pl.BlockSpec((hid, C), lambda b, k: (0, 0)),
                pl.BlockSpec((C, hid), lambda b, k: (0, 0)),
            ],
            out_specs=pl.BlockSpec((1, C, 1), lambda b, k: (b, 0, 0)),
            scratch_shapes=[
                pltpu.VMEM((C, lane), jnp.float32),   # running sum partials
                pltpu.VMEM((C, lane), jnp.float32),   # running max partials
            ],
        ),
        compiler_params=pltpu.CompilerParams(
            dimension_semantics=("parallel", "arbitrary"),
            vmem_limit_bytes=32 * 1024 * 1024,
        ),
    )(x_flat, w1, w2)

    return out.reshape(B, C, 1, 1)


def _reference(x, w_fc1, w_fc2):
    # Pure-JAX reference of the PyTorch forward (sanity check).
    x = x.astype(jnp.float32)
    avg = jnp.mean(x, axis=(2, 3))  # (B, C)
    mx = jnp.max(x, axis=(2, 3))    # (B, C)

    def mlp(p):
        h = jnp.maximum(p @ w_fc1.T, 0.0)
        return h @ w_fc2.T

    B, C = avg.shape
    return jax.nn.sigmoid(mlp(avg) + mlp(mx)).reshape(B, C, 1, 1)


if __name__ == "__main__":
    # Small shapes consistent with the module (in_planes must be >= ratio).
    B, C, H, W = 2, 32, 16, 16
    ratio = 4
    hid = C // ratio  # 8

    key = jax.random.PRNGKey(0)
    kx, k1, k2 = jax.random.split(key, 3)
    x = jax.random.normal(kx, (B, C, H, W), dtype=jnp.float32)
    # 1x1 Conv2d weights (bias=False) stored as (out_ch, in_ch) matrices.
    w_fc1 = jax.random.normal(k1, (hid, C), dtype=jnp.float32) * 0.1
    w_fc2 = jax.random.normal(k2, (C, hid), dtype=jnp.float32) * 0.1

    y = channel_attention(x, w_fc1, w_fc2)
    jax.block_until_ready(y)

    y_ref = _reference(x, w_fc1, w_fc2)
    assert y.shape == (B, C, 1, 1)
    assert jnp.allclose(y, y_ref, atol=1e-5, rtol=1e-5), "mismatch vs reference"

    print("KERNEL_OK")
</pallas_src>

<mosaic_0001>
module attributes {stable_mosaic.version = 11 : i64} {
  func.func @_channel_attention_kernel(%arg0: i32, %arg1: i32, %arg2: memref<1x32x256xf32, #tpu.memory_space<vmem>>, %arg3: memref<8x32xf32, #tpu.memory_space<vmem>>, %arg4: memref<32x8xf32, #tpu.memory_space<vmem>>, %arg5: memref<1x32x1xf32, #tpu.memory_space<vmem>>, %arg6: memref<32x128xf32, #tpu.memory_space<vmem>>, %arg7: memref<32x128xf32, #tpu.memory_space<vmem>>) attributes {dimension_semantics = [#tpu.dimension_semantics<parallel>, #tpu.dimension_semantics<arbitrary>], iteration_bounds = array<i64: 2, 1>, scalar_prefetch = 0 : i64, scratch_operands = 2 : i64, tpu.core_type = #tpu.core_type<tc>, window_params = [{transform_indices = @transform_0, window_bounds = array<i64: 1, 32, 256>}, {pipeline_mode = #tpu.pipeline_mode<synchronous>, transform_indices = @transform_1, window_bounds = array<i64: 8, 32>}, {pipeline_mode = #tpu.pipeline_mode<synchronous>, transform_indices = @transform_2, window_bounds = array<i64: 32, 8>}, {transform_indices = @transform_3, window_bounds = array<i64: 1, 32, 1>}]} {
    %c0_i32 = arith.constant 0 : i32
    %0 = arith.cmpi eq, %arg1, %c0_i32 : i32
    %1 = arith.extui %0 : i1 to i32
    %c0_i32_0 = arith.constant 0 : i32
    %2 = arith.cmpi ne, %1, %c0_i32_0 : i32
    scf.if %2 {
      %cst = arith.constant 0.000000e+00 : f32
      %22 = vector.broadcast %cst : f32 to vector<32x128xf32>
      %c0_23 = arith.constant 0 : index
      %c0_24 = arith.constant 0 : index
      %23 = vector.load %arg6[%c0_23, %c0_24] : memref<32x128xf32, #tpu.memory_space<vmem>>, vector<32x128xf32>
      tpu.vector_store %arg6[%c0_23, %c0_24], %22 {strides = array<i32>} : memref<32x128xf32, #tpu.memory_space<vmem>>, vector<32x128xf32>,
      %cst_25 = arith.constant 0xFF800000 : f32
      %24 = vector.broadcast %cst_25 : f32 to vector<32x128xf32>
      %c0_26 = arith.constant 0 : index
      %c0_27 = arith.constant 0 : index
      %25 = vector.load %arg7[%c0_26, %c0_27] : memref<32x128xf32, #tpu.memory_space<vmem>>, vector<32x128xf32>
      tpu.vector_store %arg7[%c0_26, %c0_27], %24 {strides = array<i32>} : memref<32x128xf32, #tpu.memory_space<vmem>>, vector<32x128xf32>,
    } else {
    }
    %c0 = arith.constant 0 : index
    %c0_1 = arith.constant 0 : index
    %c0_2 = arith.constant 0 : index
    %3 = vector.load %arg2[%c0, %c0_1, %c0_2] : memref<1x32x256xf32, #tpu.memory_space<vmem>>, vector<1x32x128xf32>
    %4 = vector.shape_cast %3 : vector<1x32x128xf32> to vector<32x128xf32>
    %c0_3 = arith.constant 0 : index
    %c0_4 = arith.constant 0 : index
    %5 = vector.load %arg6[%c0_3, %c0_4] : memref<32x128xf32, #tpu.memory_space<vmem>>, vector<32x128xf32>
    %6 = arith.addf %5, %4 : vector<32x128xf32>
    %c0_5 = arith.constant 0 : index
    %c0_6 = arith.constant 0 : index
    %7 = vector.load %arg6[%c0_5, %c0_6] : memref<32x128xf32, #tpu.memory_space<vmem>>, vector<32x128xf32>
    tpu.vector_store %arg6[%c0_5, %c0_6], %6 {strides = array<i32>} : memref<32x128xf32, #tpu.memory_space<vmem>>, vector<32x128xf32>,
    %c0_7 = arith.constant 0 : index
    %c0_8 = arith.constant 0 : index
    %8 = vector.load %arg7[%c0_7, %c0_8] : memref<32x128xf32, #tpu.memory_space<vmem>>, vector<32x128xf32>
    %9 = arith.maximumf %8, %4 : vector<32x128xf32>
    %c0_9 = arith.constant 0 : index
    %c0_10 = arith.constant 0 : index
    %10 = vector.load %arg7[%c0_9, %c0_10] : memref<32x128xf32, #tpu.memory_space<vmem>>, vector<32x128xf32>
    tpu.vector_store %arg7[%c0_9, %c0_10], %9 {strides = array<i32>} : memref<32x128xf32, #tpu.memory_space<vmem>>, vector<32x128xf32>,
    %c0_11 = arith.constant 0 : index
    %c0_12 = arith.constant 0 : index
    %c128 = arith.constant 128 : index
    %11 = vector.load %arg2[%c0_11, %c0_12, %c128] : memref<1x32x256xf32, #tpu.memory_space<vmem>>, vector<1x32x128xf32>
    %12 = vector.shape_cast %11 : vector<1x32x128xf32> to vector<32x128xf32>
    %c0_13 = arith.constant 0 : index
    %c0_14 = arith.constant 0 : index
    %13 = vector.load %arg6[%c0_13, %c0_14] : memref<32x128xf32, #tpu.memory_space<vmem>>, vector<32x128xf32>
    %14 = arith.addf %13, %12 : vector<32x128xf32>
    %c0_15 = arith.constant 0 : index
    %c0_16 = arith.constant 0 : index
    %15 = vector.load %arg6[%c0_15, %c0_16] : memref<32x128xf32, #tpu.memory_space<vmem>>, vector<32x128xf32>
    tpu.vector_store %arg6[%c0_15, %c0_16], %14 {strides = array<i32>} : memref<32x128xf32, #tpu.memory_space<vmem>>, vector<32x128xf32>,
    %c0_17 = arith.constant 0 : index
    %c0_18 = arith.constant 0 : index
    %16 = vector.load %arg7[%c0_17, %c0_18] : memref<32x128xf32, #tpu.memory_space<vmem>>, vector<32x128xf32>
    %17 = arith.maximumf %16, %12 : vector<32x128xf32>
    %c0_19 = arith.constant 0 : index
    %c0_20 = arith.constant 0 : index
    %18 = vector.load %arg7[%c0_19, %c0_20] : memref<32x128xf32, #tpu.memory_space<vmem>>, vector<32x128xf32>
    tpu.vector_store %arg7[%c0_19, %c0_20], %17 {strides = array<i32>} : memref<32x128xf32, #tpu.memory_space<vmem>>, vector<32x128xf32>,
    %c0_i32_21 = arith.constant 0 : i32
    %19 = arith.cmpi eq, %arg1, %c0_i32_21 : i32
    %20 = arith.extui %19 : i1 to i32
    %c0_i32_22 = arith.constant 0 : i32
    %21 = arith.cmpi ne, %20, %c0_i32_22 : i32
    scf.if %21 {
      %c0_23 = arith.constant 0 : index
      %c0_24 = arith.constant 0 : index
      %22 = vector.load %arg6[%c0_23, %c0_24] : memref<32x128xf32, #tpu.memory_space<vmem>>, vector<32x128xf32>
      %cst = arith.constant dense<0.000000e+00> : vector<32xf32>
      %23 = vector.multi_reduction <add>, %22, %cst [1] : vector<32x128xf32> to vector<32xf32>
      %24 = vector.shape_cast %23 : vector<32xf32> to vector<32x1xf32>
      %cst_25 = arith.constant 3.906250e-03 : f32
      %25 = vector.broadcast %cst_25 : f32 to vector<32x1xf32>
      %26 = arith.mulf %24, %25 : vector<32x1xf32>
      %c0_26 = arith.constant 0 : index
      %c0_27 = arith.constant 0 : index
      %27 = vector.load %arg7[%c0_26, %c0_27] : memref<32x128xf32, #tpu.memory_space<vmem>>, vector<32x128xf32>
      %cst_28 = arith.constant dense<0xFF800000> : vector<32xf32>
      %28 = vector.multi_reduction <maximumf>, %27, %cst_28 [1] : vector<32x128xf32> to vector<32xf32>
      %29 = vector.shape_cast %28 : vector<32xf32> to vector<32x1xf32>
      %30 = tpu.concatenate %26, %29 in 1 : vector<32x1xf32>, vector<32x1xf32> -> vector<32x2xf32>
      %c0_29 = arith.constant 0 : index
      %c0_30 = arith.constant 0 : index
      %31 = vector.load %arg3[%c0_29, %c0_30] : memref<8x32xf32, #tpu.memory_space<vmem>>, vector<8x32xf32>
      %cst_31 = arith.constant dense<0.000000e+00> : vector<8x2xf32>
      %32 = tpu.matmul %31, %30, %cst_31 {dimension_numbers = #tpu.dot_dimension_numbers<[1], [0], [0], [1], [0, 0, 1, 1], [], []>} : vector<8x32xf32>, vector<32x2xf32>, vector<8x2xf32> -> vector<8x2xf32>
      %cst_32 = arith.constant 0.000000e+00 : f32
      %33 = vector.broadcast %cst_32 : f32 to vector<8x2xf32>
      %34 = arith.maximumf %32, %33 : vector<8x2xf32>
      %c0_33 = arith.constant 0 : index
      %c0_34 = arith.constant 0 : index
      %35 = vector.load %arg4[%c0_33, %c0_34] : memref<32x8xf32, #tpu.memory_space<vmem>>, vector<32x8xf32>
      %cst_35 = arith.constant dense<0.000000e+00> : vector<32x2xf32>
      %36 = tpu.matmul %35, %34, %cst_35 {dimension_numbers = #tpu.dot_dimension_numbers<[1], [0], [0], [1], [0, 0, 1, 1], [], []>} : vector<32x8xf32>, vector<8x2xf32>, vector<32x2xf32> -> vector<32x2xf32>
      %37 = vector.extract_strided_slice %36 {offsets = [0, 0], sizes = [32, 1], strides = [1, 1]} : vector<32x2xf32> to vector<32x1xf32>
      %38 = vector.extract_strided_slice %36 {offsets = [0, 1], sizes = [32, 1], strides = [1, 1]} : vector<32x2xf32> to vector<32x1xf32>
      %39 = arith.addf %37, %38 : vector<32x1xf32>
      %40 = arith.negf %39 : vector<32x1xf32>
      %41 = math.exp %40 : vector<32x1xf32>
      %cst_36 = arith.constant 1.000000e+00 : f32
      %42 = vector.broadcast %cst_36 : f32 to vector<32x1xf32>
      %43 = arith.addf %42, %41 : vector<32x1xf32>
      %44 = arith.divf %42, %43 : vector<32x1xf32>
      %45 = vector.shape_cast %44 : vector<32x1xf32> to vector<1x32x1xf32>
      %c0_37 = arith.constant 0 : index
      %c0_38 = arith.constant 0 : index
      %c0_39 = arith.constant 0 : index
      %46 = vector.load %arg5[%c0_37, %c0_38, %c0_39] : memref<1x32x1xf32, #tpu.memory_space<vmem>>, vector<1x32x1xf32>
      tpu.vector_store %arg5[%c0_37, %c0_38, %c0_39], %45 {strides = array<i32>} : memref<1x32x1xf32, #tpu.memory_space<vmem>>, vector<1x32x1xf32>,
    } else {
    }
    return
  }
  func.func @transform_0(%arg0: i32, %arg1: i32) -> (i32, i32, i32) {
    %c0_i32 = arith.constant 0 : i32
    %c0_i32_0 = arith.constant 0 : i32
    return %arg0, %c0_i32, %arg1 : i32, i32, i32
  }
  func.func @transform_1(%arg0: i32, %arg1: i32) -> (i32, i32) {
    %c0_i32 = arith.constant 0 : i32
    %c0_i32_0 = arith.constant 0 : i32
    %c0_i32_1 = arith.constant 0 : i32
    return %c0_i32, %c0_i32_0 : i32, i32
  }
  func.func @transform_2(%arg0: i32, %arg1: i32) -> (i32, i32) {
    %c0_i32 = arith.constant 0 : i32
    %c0_i32_0 = arith.constant 0 : i32
    %c0_i32_1 = arith.constant 0 : i32
    return %c0_i32, %c0_i32_0 : i32, i32
  }
  func.func @transform_3(%arg0: i32, %arg1: i32) -> (i32, i32, i32) {
    %c0_i32 = arith.constant 0 : i32
    %c0_i32_0 = arith.constant 0 : i32
    %c0_i32_1 = arith.constant 0 : i32
    return %arg0, %c0_i32, %c0_i32_0 : i32, i32, i32
  }
}

</mosaic_0001>

<llo_original>
// kernel: channel_attention.1
$region0: #{channel_attention.1}
  #allocation0 [shape = 'u32[]', space=smem, size = 0x4, offset = 0x4, fixed_abs, tag = 'smem constant byte address 0x4 - core index']
  #allocation1 [shape = 'u32[144,128]{1,0:T(1,128)}', space=vmem, size = 0x12000, scoped, tag = 'internal scratch']
  #allocation2 [shape = 'f32[32,128]{1,0:T(8,128)}', space=vmem, size = 0x4000, scoped, tag = 'scratch operand']
  #allocation3 [shape = 'f32[32,128]{1,0:T(8,128)}', space=vmem, size = 0x4000, scoped, tag = 'scratch operand']
  %s0 = inlined_call_operand.vmem [shape: f32[2,32,256], index: 0, kind: input, shape index: {}]
  %s1 = inlined_call_operand.vmem [shape: f32[8,32], index: 1, kind: input, shape index: {}]
  %s2 = inlined_call_operand.vmem [shape: f32[32,8], index: 2, kind: input, shape index: {}]
  %s3 = inlined_call_operand.vmem [shape: f32[2,32,1], index: 3, kind: output, shape index: {}]
  %s4 = sld [smem:[#allocation0]]
  $region53: #{channel_attention.1} parent=0
    _
  %s6 = ssub.s32 1, %s4
  %s7 = scalar_select 0, %s6, %s4
  loop: start=0, step=1, limit=4
  $region2: #{channel_attention.1} parent=0 // loop_pre_header
    _
  $region3: #{channel_attention.1} parent=0 // loop_header
    %s9 = sphi 0, %s13
    %p10 = scmp.ge.s32.totalorder %s9, 4
    %s16 = sphi 0, %s28
    %s17 = sphi 0, %s24
    %s18 = sphi 0, %s16
    %s19 = sphi 0, %s17
    %s20 = sphi 0, %s18
    %s21 = sphi 0, %s19
    %s33 = sphi 0, %s35
    %s36 = sphi 0, %s33
    %s37 = sphi 0, %s36
    %s53 = sphi 0, %s37
    %s57 = sphi 0, %s57
    %s59 = sphi 0, %s57
    %s60 = sphi 0, %s59
    %s74 = sphi 0, %s60
    %s78 = sphi 0, %s78
    %s80 = sphi 0, %s78
    %s81 = sphi 0, %s80
    %s95 = sphi 0, %s81
    %s101 = sphi 0, %s103
    %s104 = sphi 0, %s101
    %s105 = sphi 0, %s104
    %s121 = sphi 0, %s105
  $region4: #{channel_attention.1} parent=0 // loop_header_branch
    %12 = sbr.rel (%p10) target = $region8
  $region5: #{channel_attention.1} parent=0 // loop_body
    %s14 = ssub.s32 %s9, 1
    %s15 = ssub.s32 %s9, 2
    %s22 = sadd.s32 1, %s17
    %p23 = scmp.ge.s32.totalorder %s22, 1
    %s24 = scalar_select %p23, 0, %s22
    %s25 = sadd.s32 1, %s16
    %s26 = scalar_select %p23, %s25, %s16
    %p27 = scmp.ge.s32.totalorder %s26, 2
    %s28 = scalar_select %p27, 0, %s26
    %s29 = ssub.s32 %s16, %s28
    %s30 = ssub.s32 %s17, %s24
    %s31 = sor.u32 %s29, %s30
    %p32 = scmp.eq.s32.totalorder %s31, 0
    %s34 = sadd.s32 %s33, 1
    %s35 = scalar_select %p32, %s33, %s34
    %p38 = pneg %p32
    %p39 = scmp.eq.s32.totalorder %s9, 1
    %p40 = por %p38, %p39
    %p41 = scmp.ne.s32.totalorder %s33, %s36
    %p42 = scmp.eq.s32.totalorder %s9, 0
    %p43 = por %p41, %p42
    %p44 = scmp.ne.s32.totalorder %s33, %s36
    %p45 = scmp.eq.s32.totalorder %s14, 1
    %p46 = por %p44, %p45
    %p47 = scmp.ne.s32.totalorder %s36, %s37
    %p48 = scmp.eq.s32.totalorder %s14, 0
    %p49 = por %p47, %p48
    %p50 = scmp.ne.s32.totalorder %s36, %s37
    %p51 = scmp.eq.s32.totalorder %s15, 1
    %p52 = por %p50, %p51
    %p54 = scmp.ne.s32.totalorder %s37, %s53
    %p55 = scmp.eq.s32.totalorder %s15, 0
    %p56 = por %p54, %p55
    %s58 = sadd.s32 %s57, 1
    %p61 = scmp.eq.s32.totalorder %s9, 1
    %p62 = scmp.ne.s32.totalorder %s57, %s59
    %p63 = scmp.eq.s32.totalorder %s9, 0
    %p64 = por %p62, %p63
    %p65 = scmp.ne.s32.totalorder %s57, %s59
    %p66 = scmp.eq.s32.totalorder %s14, 1
    %p67 = por %p65, %p66
    %p68 = scmp.ne.s32.totalorder %s59, %s60
    %p69 = scmp.eq.s32.totalorder %s14, 0
    %p70 = por %p68, %p69
    %p71 = scmp.ne.s32.totalorder %s59, %s60
    %p72 = scmp.eq.s32.totalorder %s15, 1
    %p73 = por %p71, %p72
    %p75 = scmp.ne.s32.totalorder %s60, %s74
    %p76 = scmp.eq.s32.totalorder %s15, 0
    %p77 = por %p75, %p76
    %s79 = sadd.s32 %s78, 1
    %p82 = scmp.eq.s32.totalorder %s9, 1
    %p83 = scmp.ne.s32.totalorder %s78, %s80
    %p84 = scmp.eq.s32.totalorder %s9, 0
    %p85 = por %p83, %p84
    %p86 = scmp.ne.s32.totalorder %s78, %s80
    %p87 = scmp.eq.s32.totalorder %s14, 1
    %p88 = por %p86, %p87
    %p89 = scmp.ne.s32.totalorder %s80, %s81
    %p90 = scmp.eq.s32.totalorder %s14, 0
    %p91 = por %p89, %p90
    %p92 = scmp.ne.s32.totalorder %s80, %s81
    %p93 = scmp.eq.s32.totalorder %s15, 1
    %p94 = por %p92, %p93
    %p96 = scmp.ne.s32.totalorder %s81, %s95
    %p97 = scmp.eq.s32.totalorder %s15, 0
    %p98 = por %p96, %p97
    %s99 = ssub.s32 %s16, %s28
    %p100 = scmp.eq.s32.totalorder %s99, 0
    %s102 = sadd.s32 %s101, 1
    %s103 = scalar_select %p100, %s101, %s102
    %p106 = pneg %p100
    %p107 = scmp.eq.s32.totalorder %s9, 1
    %p108 = por %p106, %p107
    %p109 = scmp.ne.s32.totalorder %s101, %s104
    %p110 = scmp.eq.s32.totalorder %s9, 0
    %p111 = por %p109, %p110
    %p112 = scmp.ne.s32.totalorder %s101, %s104
    %p113 = scmp.eq.s32.totalorder %s14, 1
    %p114 = por %p112, %p113
    %p115 = scmp.ne.s32.totalorder %s104, %s105
    %p116 = scmp.eq.s32.totalorder %s14, 0
    %p117 = por %p115, %p116
    %p118 = scmp.ne.s32.totalorder %s104, %s105
    %p119 = scmp.eq.s32.totalorder %s15, 1
    %p120 = por %p118, %p119
    %p122 = scmp.ne.s32.totalorder %s105, %s121
    %p123 = scmp.eq.s32.totalorder %s15, 0
    %p124 = por %p122, %p123
    %p125 = scmp.le.s32.totalorder 1, %s9
    %p126 = scmp.lt.s32.totalorder %s9, 3
    %p127 = pnand %p125, %p126
    %p128 = pneg %p127
    // Predicated region
    $region9: #{channel_attention.1} parent=5 // pred_check
      _
    $region10: #{channel_attention.1} parent=5 // pred_check_branch
      %130 = sbr.rel (%p127) target = $region12
    $region11: #{channel_attention.1} parent=5 // pred_region
      %s131 = ssub.s32 %s9, 1
      // Predicated region
      $region13: #{channel_attention.1} parent=11 // pred_check
        %p132 = pneg %p70
      $region14: #{channel_attention.1} parent=11 // pred_check_branch
        %134 = sbr.rel (%p132) target = $region16
      $region15: #{channel_attention.1} parent=11 // pred_region
        _
      $region16: #{channel_attention.1} parent=11 // pred_fallthru
        _
      // Predicated region
      $region17: #{channel_attention.1} parent=11 // pred_check
        %p135 = pneg %p91
      $region18: #{channel_attention.1} parent=11 // pred_check_branch
        %137 = sbr.rel (%p135) target = $region20
      $region19: #{channel_attention.1} parent=11 // pred_region
        _
      $region20: #{channel_attention.1} parent=11 // pred_fallthru
        _
    $region12: #{channel_attention.1} parent=5 // pred_fallthru
      _
    %p138 = scmp.lt.s32.totalorder %s9, 2
    // Predicated region
    $region21: #{channel_attention.1} parent=5 // pred_check
      %p139 = pneg %p138
    $region22: #{channel_attention.1} parent=5 // pred_check_branch
      %141 = sbr.rel (%p139) target = $region24
    $region23: #{channel_attention.1} parent=5 // pred_region
      // Predicated region
      $region25: #{channel_attention.1} parent=23 // pred_check
        %p142 = pneg %p43
      $region26: #{channel_attention.1} parent=23 // pred_check_branch
        %144 = sbr.rel (%p142) target = $region28
      $region27: #{channel_attention.1} parent=23 // pred_region
        %s145 = smul.u32 2, %s17
        %p146 = scmp.lt.s32.totalorder %s16, 1
        %s147 = scalar_select %p146, %s16, 1
        %p148 = scmp.lt.s32.totalorder %s145, 1
        %s149 = scalar_select %p148, %s145, 1
        %s150 = smul.addr %s147, 8
        %s151 = sadd.s32 %s149, %s150
        %s152 = smul.addr %s151, 8
        %s153 = scalar_lea.vmem %s0, %s152
        %s154 = smul.u32 2, %s17
      $region28: #{channel_attention.1} parent=23 // pred_fallthru
        _
    $region24: #{channel_attention.1} parent=5 // pred_fallthru
      _
    %p155 = scmp.le.s32.totalorder 1, %s9
    %p156 = scmp.lt.s32.totalorder %s9, 3
    %p157 = pnand %p155, %p156
    %p158 = pneg %p157
    // Predicated region
    $region29: #{channel_attention.1} parent=5 // pred_check
      _
    $region30: #{channel_attention.1} parent=5 // pred_check_branch
      %160 = sbr.rel (%p157) target = $region32
    $region31: #{channel_attention.1} parent=5 // pred_region
      %s161 = ssub.s32 %s9, 1
      %s162 = smul.u32 2, %s19
      %p163 = scmp.lt.s32.totalorder %s18, 1
      %s164 = scalar_select %p163, %s18, 1
      %p165 = scmp.lt.s32.totalorder %s162, 1
      %s166 = scalar_select %p165, %s162, 1
      %s167 = smul.addr %s164, 8
      %s168 = sadd.s32 %s166, %s167
      %s169 = smul.addr %s168, 8
      %s170 = scalar_lea.vmem %s0, %s169
      %p171 = pneg %p49
      %p172 = pneg %p46
      %p173 = pneg %p70
      %p174 = pneg %p67
      %p175 = pneg %p91
      %p176 = pneg %p88
      %p177 = pneg %p117
      %p178 = pneg %p114
      %p179 = scmp.lt.s32.totalorder %s18, 1
      %s180 = scalar_select %p179, %s18, 1
      %s181 = smul.addr %s180, 4
      %s182 = smul.addr %s181, 8
      %s183 = scalar_lea.vmem %s3, %s182
      %s184 = smul.u32 2, %s19
      %p185 = scmp.lt.s32.totalorder %s18, 1
      %s186 = scalar_select %p185, %s18, 1
      %p187 = scmp.lt.s32.totalorder %s184, 1
      %s188 = scalar_select %p187, %s184, 1
      %s189 = smul.addr %s186, 8
      %s190 = sadd.s32 %s188, %s189
      %s191 = smul.addr %s190, 8
      %s192 = scalar_lea.vmem %s0, %s191
      %s193 = smul.u32 2, %s19
      %p194 = scmp.lt.s32.totalorder %s18, 1
      %s195 = scalar_select %p194, %s18, 1
      %s196 = smul.addr %s195, 4
      %s197 = smul.addr %s196, 8
      %s198 = scalar_lea.vmem %s3, %s197
      %p199 = scmp.eq.s32.totalorder %s19, 0
      // Predicated region
      $region33: #{channel_attention.1} parent=31 // pred_check
        %p200 = pneg %p199
      $region34: #{channel_attention.1} parent=31 // pred_check_branch
        %202 = sbr.rel (%p200) target = $region36
      $region35: #{channel_attention.1} parent=31 // pred_region
        %203 = vst [vmem:[#allocation2] sm:$0xff] 0.0
        %204 = vst [vmem:[#allocation2 + $0x8] sm:$0xff] 0.0
        %205 = vst [vmem:[#allocation2 + $0x10] sm:$0xff] 0.0
        %206 = vst [vmem:[#allocation2 + $0x18] sm:$0xff] 0.0
        %207 = vst [vmem:[#allocation3] sm:$0xff] -inf
        %208 = vst [vmem:[#allocation3 + $0x8] sm:$0xff] -inf
        %209 = vst [vmem:[#allocation3 + $0x10] sm:$0xff] -inf
        %210 = vst [vmem:[#allocation3 + $0x18] sm:$0xff] -inf
      $region36: #{channel_attention.1} parent=31 // pred_fallthru
        _
      %v211 = vld [vmem:[%s192] sm:$0xff]
      %v212 = vld [vmem:[%s192 + $0x10] sm:$0xff]
      %v213 = vld [vmem:[%s192 + $0x20] sm:$0xff]
      %v214 = vld [vmem:[%s192 + $0x30] sm:$0xff]
      %v215 = vld [vmem:[#allocation2] sm:$0xff]
      %v216 = vld [vmem:[#allocation2 + $0x8] sm:$0xff]
      %v217 = vld [vmem:[#allocation2 + $0x10] sm:$0xff]
      %v218 = vld [vmem:[#allocation2 + $0x18] sm:$0xff]
      %v219 = vadd.f32 %v215, %v211
      %v220 = vadd.f32 %v216, %v212
      %v221 = vadd.f32 %v217, %v213
      %v222 = vadd.f32 %v218, %v214
      %223 = vst [vmem:[#allocation2] sm:$0xff] %v219
      %224 = vst [vmem:[#allocation2 + $0x8] sm:$0xff] %v220
      %225 = vst [vmem:[#allocation2 + $0x10] sm:$0xff] %v221
      %226 = vst [vmem:[#allocation2 + $0x18] sm:$0xff] %v222
      %v227 = vld [vmem:[#allocation3] sm:$0xff]
      %v228 = vld [vmem:[#allocation3 + $0x8] sm:$0xff]
      %v229 = vld [vmem:[#allocation3 + $0x10] sm:$0xff]
      %v230 = vld [vmem:[#allocation3 + $0x18] sm:$0xff]
      %v231 = vmax.f32 %v227, %v211
      %v232 = vmax.f32 %v228, %v212
      %v233 = vmax.f32 %v229, %v213
      %v234 = vmax.f32 %v230, %v214
      %235 = vst [vmem:[#allocation3] sm:$0xff] %v231
      %236 = vst [vmem:[#allocation3 + $0x8] sm:$0xff] %v232
      %237 = vst [vmem:[#allocation3 + $0x10] sm:$0xff] %v233
      %238 = vst [vmem:[#allocation3 + $0x18] sm:$0xff] %v234
      %v239 = vld [vmem:[%s192 + $0x8] sm:$0xff]
      %v240 = vld [vmem:[%s192 + $0x18] sm:$0xff]
      %v241 = vld [vmem:[%s192 + $0x28] sm:$0xff]
      %v242 = vld [vmem:[%s192 + $0x38] sm:$0xff]
      %v243 = vld [vmem:[#allocation2] sm:$0xff]
      %v244 = vld [vmem:[#allocation2 + $0x8] sm:$0xff]
      %v245 = vld [vmem:[#allocation2 + $0x10] sm:$0xff]
      %v246 = vld [vmem:[#allocation2 + $0x18] sm:$0xff]
      %v247 = vadd.f32 %v243, %v239
      %v248 = vadd.f32 %v244, %v240
      %v249 = vadd.f32 %v245, %v241
      %v250 = vadd.f32 %v246, %v242
      %251 = vst [vmem:[#allocation2] sm:$0xff] %v247
      %252 = vst [vmem:[#allocation2 + $0x8] sm:$0xff] %v248
      %253 = vst [vmem:[#allocation2 + $0x10] sm:$0xff] %v249
      %254 = vst [vmem:[#allocation2 + $0x18] sm:$0xff] %v250
      %v255 = vld [vmem:[#allocation3] sm:$0xff]
      %v256 = vld [vmem:[#allocation3 + $0x8] sm:$0xff]
      %v257 = vld [vmem:[#allocation3 + $0x10] sm:$0xff]
      %v258 = vld [vmem:[#allocation3 + $0x18] sm:$0xff]
      %v259 = vmax.f32 %v255, %v239
      %v260 = vmax.f32 %v256, %v240
      %v261 = vmax.f32 %v257, %v241
      %v262 = vmax.f32 %v258, %v242
      %263 = vst [vmem:[#allocation3] sm:$0xff] %v259
      %264 = vst [vmem:[#allocation3 + $0x8] sm:$0xff] %v260
      %265 = vst [vmem:[#allocation3 + $0x10] sm:$0xff] %v261
      %266 = vst [vmem:[#allocation3 + $0x18] sm:$0xff] %v262
      // Predicated region
      $region37: #{channel_attention.1} parent=31 // pred_check
        %p267 = pneg %p199
      $region38: #{channel_attention.1} parent=31 // pred_check_branch
        %269 = sbr.rel (%p267) target = $region40
      $region39: #{channel_attention.1} parent=31 // pred_region
        %v270 = vld [vmem:[#allocation2] sm:$0xff]
        %v271 = vld [vmem:[#allocation2 + $0x8] sm:$0xff]
        %v272 = vld [vmem:[#allocation2 + $0x10] sm:$0xff]
        %v273 = vld [vmem:[#allocation2 + $0x18] sm:$0xff]
        %274 = vadd.xlane.f32.xlu0 %v270
        %v275 = vpop.xlane.xlu0 %274
        %276 = vadd.xlane.f32.xlu0 %v271
        %v277 = vpop.xlane.xlu0 %276
        %278 = vadd.xlane.f32.xlu0 %v272
        %v279 = vpop.xlane.xlu0 %278
        %280 = vadd.xlane.f32.xlu0 %v273
        %v281 = vpop.xlane.xlu0 %280
        %v282 = vmul.f32 %v275, 0.00390625
        %v283 = vmul.f32 %v277, 0.00390625
        %v284 = vmul.f32 %v279, 0.00390625
        %v285 = vmul.f32 %v281, 0.00390625
        %v286 = vld [vmem:[#allocation3] sm:$0xff]
        %v287 = vld [vmem:[#allocation3 + $0x8] sm:$0xff]
        %v288 = vld [vmem:[#allocation3 + $0x10] sm:$0xff]
        %v289 = vld [vmem:[#allocation3 + $0x18] sm:$0xff]
        %290 = vmax.xlane.f32.xlu0 %v286
        %v291 = vpop.xlane.xlu0 %290
        %292 = vmax.xlane.f32.xlu0 %v287
        %v293 = vpop.xlane.xlu0 %292
        %294 = vmax.xlane.f32.xlu0 %v288
        %v295 = vpop.xlane.xlu0 %294
        %296 = vmax.xlane.f32.xlu0 %v289
        %v297 = vpop.xlane.xlu0 %296
        %vm298 = vcmask 7168
        %v299 = vsel %vm298, %v282, %v291
        %v300 = vsel %vm298, %v283, %v293
        %v301 = vsel %vm298, %v284, %v295
        %v302 = vsel %vm298, %v285, %v297
        %v303 = vld [vmem:[%s1] sm:$0xff]
        %vm304 = vcmask 261120
        %v306 = vsel %vm304, %v303, 0
        %308 = vmatprep.subr.mxu0 0.0
        %309 = vmatpush1.msra.mxu0 %v299
        %310 = vmatprep.subr.mxu0 0.0
        %311 = vmatpush1.msra.mxu0 %v300
        %312 = vmatprep.subr.mxu0 0.0
        %313 = vmatpush1.msra.mxu0 %v301
        %314 = vmatprep.subr.mxu0 0.0
        %315 = vmatpush1.msra.mxu0 %v302
        %316 = vmatprep.subr.mxu0 0.0
        %317 = vmatpush1.msra.mxu0 0.0
        %318 = vmatprep.subr.mxu0 0.0
        %319 = vmatpush1.msra.mxu0 0.0
        %320 = vmatprep.subr.mxu0 0.0
        %321 = vmatpush1.msra.mxu0 0.0
        %322 = vmatprep.subr.mxu0 0.0
        %323 = vmatpush1.msra.mxu0 0.0
        %324 = vmatprep.subr.mxu0 0.0
        %325 = vmatpush1.msra.mxu0 0.0
        %326 = vmatprep.subr.mxu0 0.0
        %327 = vmatpush1.msra.mxu0 0.0
        %328 = vmatprep.subr.mxu0 0.0
        %329 = vmatpush1.msra.mxu0 0.0
        %330 = vmatprep.subr.mxu0 0.0
        %331 = vmatpush1.msra.mxu0 0.0
        %332 = vmatprep.subr.mxu0 0.0
        %333 = vmatpush1.msra.mxu0 0.0
        %334 = vmatprep.subr.mxu0 0.0
        %335 = vmatpush1.msra.mxu0 0.0
        %336 = vmatprep.subr.mxu0 0.0
        %337 = vmatpush1.msra.mxu0 0.0
        %338 = vmatprep.subr.mxu0 0.0
        %339 = vmatpush1.msra.mxu0 0.0
        %340 = vmatprep.subr.mxu0 0.0
        %341 = vmatpush1.msra.mxu0 0.0
        %342 = vmatprep.subr.mxu0 0.0
        %343 = vmatpush1.msra.mxu0 0.0
        %344 = vmatprep.subr.mxu0 0.0
        %345 = vmatpush1.msra.mxu0 0.0
        %346 = vmatprep.subr.mxu0 0.0
        %347 = vmatpush1.msra.mxu0 0.0
        %348 = vmatprep.subr.mxu0 0.0
        %349 = vmatpush1.msra.mxu0 0.0
        %350 = vmatprep.subr.mxu0 0.0
        %351 = vmatpush1.msra.mxu0 0.0
        %352 = vmatprep.subr.mxu0 0.0
        %353 = vmatpush1.msra.mxu0 0.0
        %354 = vmatprep.subr.mxu0 0.0
        %355 = vmatpush1.msra.mxu0 0.0
        %356 = vmatprep.subr.mxu0 0.0
        %357 = vmatpush1.msra.mxu0 0.0
        %358 = vmatprep.subr.mxu0 0.0
        %359 = vmatpush1.msra.mxu0 0.0
        %360 = vmatprep.subr.mxu0 0.0
        %361 = vmatpush1.msra.mxu0 0.0
        %362 = vmatprep.subr.mxu0 0.0
        %363 = vmatpush1.msra.mxu0 0.0
        %364 = vmatprep.subr.mxu0 0.0
        %365 = vmatpush1.msra.mxu0 0.0
        %366 = vmatprep.subr.mxu0 0.0
        %367 = vmatpush1.msra.mxu0 0.0
        %368 = vmatprep.subr.mxu0 0.0
        %369 = vmatpush1.msra.mxu0 0.0
        %370 = vmatprep.subr.mxu0 0.0
        %371 = vmatpush1.msra.mxu0 0.0
        %372 = vmatprep.mubr.f32.mxu0 0.0
        %373 = vmatmul.mubr.f32.gmra.mrb[0].mxu0 %v306
        %v374 = vpop.f32.mrb[0].mxu0
        %v375 = vadd.f32 0.0, %v374
        %v376 = vpop.f32.mrb[0].mxu0
        %377 = vdwg.mxu0
        %v378 = vmax.f32 %v375, 0.0
        %v379 = vld [vmem:[%s2] sm:$0xff]
        %v380 = vld [vmem:[%s2 + $0x8] sm:$0xff]
        %v381 = vld [vmem:[%s2 + $0x10] sm:$0xff]
        %v382 = vld [vmem:[%s2 + $0x18] sm:$0xff]
        %vm383 = vcmask 64512
        %v385 = vsel %vm383, %v379, 0
        %v388 = vsel %vm383, %v380, 0
        %v391 = vsel %vm383, %v381, 0
        %v394 = vsel %vm383, %v382, 0
        %396 = vmatprep.subr.mxu0 0.0
        %397 = vmatpush1.msra.mxu0 %v378
        %398 = vmatprep.subr.mxu0 0.0
        %399 = vmatpush1.msra.mxu0 0.0
        %400 = vmatprep.subr.mxu0 0.0
        %401 = vmatpush1.msra.mxu0 0.0
        %402 = vmatprep.subr.mxu0 0.0
        %403 = vmatpush1.msra.mxu0 0.0
        %404 = vmatprep.subr.mxu0 0.0
        %405 = vmatpush1.msra.mxu0 0.0
        %406 = vmatprep.subr.mxu0 0.0
        %407 = vmatpush1.msra.mxu0 0.0
        %408 = vmatprep.subr.mxu0 0.0
        %409 = vmatpush1.msra.mxu0 0.0
        %410 = vmatprep.subr.mxu0 0.0
        %411 = vmatpush1.msra.mxu0 0.0
        %412 = vmatprep.subr.mxu0 0.0
        %413 = vmatpush1.msra.mxu0 0.0
        %414 = vmatprep.subr.mxu0 0.0
        %415 = vmatpush1.msra.mxu0 0.0
        %416 = vmatprep.subr.mxu0 0.0
        %417 = vmatpush1.msra.mxu0 0.0
        %418 = vmatprep.subr.mxu0 0.0
        %419 = vmatpush1.msra.mxu0 0.0
        %420 = vmatprep.subr.mxu0 0.0
        %421 = vmatpush1.msra.mxu0 0.0
        %422 = vmatprep.subr.mxu0 0.0
        %423 = vmatpush1.msra.mxu0 0.0
        %424 = vmatprep.subr.mxu0 0.0
        %425 = vmatpush1.msra.mxu0 0.0
        %426 = vmatprep.subr.mxu0 0.0
        %427 = vmatpush1.msra.mxu0 0.0
        %428 = vmatprep.subr.mxu0 0.0
        %429 = vmatpush1.msra.mxu0 0.0
        %430 = vmatprep.subr.mxu0 0.0
        %431 = vmatpush1.msra.mxu0 0.0
        %432 = vmatprep.subr.mxu0 0.0
        %433 = vmatpush1.msra.mxu0 0.0
        %434 = vmatprep.subr.mxu0 0.0
        %435 = vmatpush1.msra.mxu0 0.0
        %436 = vmatprep.subr.mxu0 0.0
        %437 = vmatpush1.msra.mxu0 0.0
        %438 = vmatprep.subr.mxu0 0.0
        %439 = vmatpush1.msra.mxu0 0.0
        %440 = vmatprep.subr.mxu0 0.0
        %441 = vmatpush1.msra.mxu0 0.0
        %442 = vmatprep.subr.mxu0 0.0
        %443 = vmatpush1.msra.mxu0 0.0
        %444 = vmatprep.subr.mxu0 0.0
        %445 = vmatpush1.msra.mxu0 0.0
        %446 = vmatprep.subr.mxu0 0.0
        %447 = vmatpush1.msra.mxu0 0.0
        %448 = vmatprep.subr.mxu0 0.0
        %449 = vmatpush1.msra.mxu0 0.0
        %450 = vmatprep.subr.mxu0 0.0
        %451 = vmatpush1.msra.mxu0 0.0
        %452 = vmatprep.subr.mxu0 0.0
        %453 = vmatpush1.msra.mxu0 0.0
        %454 = vmatprep.subr.mxu0 0.0
        %455 = vmatpush1.msra.mxu0 0.0
        %456 = vmatprep.subr.mxu0 0.0
        %457 = vmatpush1.msra.mxu0 0.0
        %458 = vmatprep.subr.mxu0 0.0
        %459 = vmatpush1.msra.mxu0 0.0
        %460 = vmatprep.mubr.f32.mxu0 0.0
        %461 = vmatmul.mubr.f32.gmra.mrb[0].mxu0 %v385
        %v462 = vpop.f32.mrb[0].mxu0
        %v463 = vadd.f32 0.0, %v462
        %v464 = vpop.f32.mrb[0].mxu0
        %465 = vmatprep.mubr.f32.mxu0 0.0
        %466 = vmatmul.mubr.f32.gmra.mrb[0].mxu0 %v388
        %v467 = vpop.f32.mrb[0].mxu0
        %v468 = vadd.f32 0.0, %v467
        %v469 = vpop.f32.mrb[0].mxu0
        %470 = vmatprep.mubr.f32.mxu0 0.0
        %471 = vmatmul.mubr.f32.gmra.mrb[0].mxu0 %v391
        %v472 = vpop.f32.mrb[0].mxu0
        %v473 = vadd.f32 0.0, %v472
        %v474 = vpop.f32.mrb[0].mxu0
        %475 = vmatprep.mubr.f32.mxu0 0.0
        %476 = vmatmul.mubr.f32.gmra.mrb[0].mxu0 %v394
        %v477 = vpop.f32.mrb[0].mxu0
        %v478 = vadd.f32 0.0, %v477
        %v479 = vpop.f32.mrb[0].mxu0
        %480 = vdwg.mxu0
        %485 = vrot.lane.b32.xlu0 %v463, 127
        %v486 = vpop.permute.xlu0 %485
        %487 = vrot.lane.b32.xlu0 %v468, 127
        %v488 = vpop.permute.xlu0 %487
        %489 = vrot.lane.b32.xlu0 %v473, 127
        %v490 = vpop.permute.xlu0 %489
        %491 = vrot.lane.b32.xlu0 %v478, 127
        %v492 = vpop.permute.xlu0 %491
        %v497 = vadd.f32 %v463, %v486
        %v498 = vadd.f32 %v468, %v488
        %v499 = vadd.f32 %v473, %v490
        %v500 = vadd.f32 %v478, %v492
        %v501 = vxor.u32 %v497, 2147483648
        %v502 = vxor.u32 %v498, 2147483648
        %v503 = vxor.u32 %v499, 2147483648
        %v504 = vxor.u32 %v500, 2147483648
        %v505 = vmul.f32 %v501, 1.442695
        %v506 = vpow.pop %v505
        %v507 = vmul.f32 %v502, 1.442695
        %v508 = vpow.pop %v507
        %v509 = vmul.f32 %v503, 1.442695
        %v510 = vpow.pop %v509
        %v511 = vmul.f32 %v504, 1.442695
        %v512 = vpow.pop %v511
        %v513 = vadd.f32 %v506, 1.0
        %v514 = vadd.f32 %v508, 1.0
        %v515 = vadd.f32 %v510, 1.0
        %v516 = vadd.f32 %v512, 1.0
        %v517 = vrcp.pop %v513
        %v518 = vmul.f32 1.0, %v517
        %v519 = vrcp.pop %v514
        %v520 = vmul.f32 1.0, %v519
        %v521 = vrcp.pop %v515
        %v522 = vmul.f32 1.0, %v521
        %v523 = vrcp.pop %v516
        %v524 = vmul.f32 1.0, %v523
        %525 = vst.msk [vmem:[%s198] sm:$0xff] %vm298, %v518
        %526 = vst.msk [vmem:[%s198 + $0x8] sm:$0xff] %vm298, %v520
        %527 = vst.msk [vmem:[%s198 + $0x10] sm:$0xff] %vm298, %v522
        %528 = vst.msk [vmem:[%s198 + $0x18] sm:$0xff] %vm298, %v524
      $region40: #{channel_attention.1} parent=31 // pred_fallthru
        _
      %p529 = scmp.lt.s32.totalorder %s18, 1
      %s530 = scalar_select %p529, %s18, 1
      %s531 = smul.addr %s530, 4
      %s532 = smul.addr %s531, 8
      %s533 = scalar_lea.vmem %s3, %s532
      // Predicated region
      $region41: #{channel_attention.1} parent=31 // pred_check
        %p534 = pneg %p114
      $region42: #{channel_attention.1} parent=31 // pred_check_branch
        %536 = sbr.rel (%p534) target = $region44
      $region43: #{channel_attention.1} parent=31 // pred_region
        _
      $region44: #{channel_attention.1} parent=31 // pred_fallthru
        _
    $region32: #{channel_attention.1} parent=5 // pred_fallthru
      _
    %p537 = scmp.le.s32.totalorder 2, %s9
    // Predicated region
    $region45: #{channel_attention.1} parent=5 // pred_check
      %p538 = pneg %p537
    $region46: #{channel_attention.1} parent=5 // pred_check_branch
      %540 = sbr.rel (%p538) target = $region48
    $region47: #{channel_attention.1} parent=5 // pred_region
      %s541 = ssub.s32 %s9, 2
      // Predicated region
      $region49: #{channel_attention.1} parent=47 // pred_check
        %p542 = pneg %p120
      $region50: #{channel_attention.1} parent=47 // pred_check_branch
        %544 = sbr.rel (%p542) target = $region52
      $region51: #{channel_attention.1} parent=47 // pred_region
        %p545 = scmp.lt.s32.totalorder %s20, 1
        %s546 = scalar_select %p545, %s20, 1
        %s547 = smul.addr %s546, 4
        %s548 = smul.addr %s547, 8
        %s549 = scalar_lea.vmem %s3, %s548
      $region52: #{channel_attention.1} parent=47 // pred_fallthru
        _
    $region48: #{channel_attention.1} parent=5 // pred_fallthru
      _
  $region6: #{channel_attention.1} parent=0 // loop_footer
    %s13 = sadd.s32 1, %s9
  $region7: #{channel_attention.1} parent=0 // loop_footer_branch
    %8 = sbr.rel target = $region3
  $region8: #{channel_attention.1} parent=0 // loop_exit
    _

</llo_original>
